<compile_context>
chip_gen: v7x
topology: tpu7x:2x2x1
jax: 0.10.0
libtpu: 0.0.40
codegen_flags: <defaults>
</compile_context>

<pallas_src>
import math

import jax
import jax.numpy as jnp
from jax.experimental import pallas as pl
from jax.experimental.pallas import tpu as pltpu

BETA = 100.0
INV_BETA = 1.0 / BETA
THRESHOLD = 20.0  # PyTorch softplus default threshold


def _round_up(n, m):
    return ((n + m - 1) // m) * m


def _packing_config(D):
    """Rows packed per lane row, and the packed feature width L = pack*D."""
    pack = max(1, 128 // D)
    return pack, pack * D


def pack_gs_regress_params(weight, bias, *, mxu_dtype=jnp.float32):
    """Pack the nn.Linear parameters once at init.

    weight: (D, D) in PyTorch (out_features, in_features) layout; bias: (D,).
    Returns (block-diagonal weight (L, L), tiled bias (1, L)).
    mxu_dtype=jnp.bfloat16 selects the single-pass bf16 MXU path (v5e option).
    """
    D = weight.shape[0]
    pack, L = _packing_config(D)
    wt = weight.T.astype(mxu_dtype)                       # (in, out)
    wbd = jnp.kron(jnp.eye(pack, dtype=mxu_dtype), wt)    # (L, L) block-diagonal
    b_packed = jnp.tile(bias.astype(jnp.float32), pack).reshape(1, L)
    return wbd, b_packed


def _gs_regress_kernel(x_ref, w_ref, b_ref, o_ref):
    # x_ref: (tm_p, L)  packed activations (`pack` original rows per lane row)
    # w_ref: (L, L)     resident block-diagonal weight (already transposed)
    # b_ref: (1, L)     bias tiled `pack` times
    # o_ref: (tm_p, L)  packed output
    x = x_ref[...].astype(jnp.float32)

    # softplus(x, beta=100) with PyTorch's threshold semantics.  jnp.where
    # evaluates both branches: exp(100*x) overflows to inf for x > ~0.88, and
    # log1p(inf)=inf is cleanly masked by the where (no NaN).  Keep this exact
    # select form if editing.
    z = BETA * x
    sp = jnp.where(z > THRESHOLD, x, jnp.log1p(jnp.exp(z)) * INV_BETA)

    # Linear: each D-lane group is an independent copy of row @ W^T (block-diag
    # weight), so the matmul never mixes rows -> ragged-tail garbage rows stay
    # confined to dropped output rows.
    y = jnp.dot(sp.astype(w_ref.dtype), w_ref[...],
                preferred_element_type=jnp.float32)
    o_ref[...] = (y + b_ref[...]).astype(o_ref.dtype)


def gs_pointcloud_regresser(x, wbd, b_packed, *, tm=8192):
    """x: (..., D); wbd/b_packed: packed params from pack_gs_regress_params.

    tm = max packed rows per grid step (each packed row holds `128 // D` points).
    """
    orig_shape = x.shape
    D = orig_shape[-1]
    L = wbd.shape[0]
    pack = L // D
    assert wbd.shape == (L, L) and b_packed.shape == (1, L) and pack * D == L

    M = math.prod(orig_shape[:-1]) if len(orig_shape) > 1 else orig_shape[0] // D
    M = math.prod(orig_shape[:-1])

    # Tiny pad only when M is not a multiple of `pack` (<= pack-1 rows).  When
    # M % pack == 0 (the common case) there is no pad / copy at all.
    M_round = _round_up(M, pack)
    x2 = x.reshape(M, D)
    if M_round != M:
        x2 = jnp.pad(x2, ((0, M_round - M), (0, 0)))
    Mp = M_round // pack
    xp = x2.reshape(Mp, L)   # contiguous row-major reshape: no data movement

    # Tile sizing: cap at `tm` packed rows (8192 f32 rows * 128 lanes, in+out
    # double-buffered = 16 MiB) but never use more than ceil(Mp/2) so the grid
    # keeps >= 2 steps for the megacore "parallel" split (v7x).
    tm_p = max(8, min(_round_up(tm, 8), _round_up(pl.cdiv(Mp, 2), 8)))
    grid_m = pl.cdiv(Mp, tm_p)   # ragged final block is masked by Pallas

    out = pl.pallas_call(
        _gs_regress_kernel,
        out_shape=jax.ShapeDtypeStruct((Mp, L), x.dtype),
        grid_spec=pltpu.PrefetchScalarGridSpec(
            num_scalar_prefetch=0,
            grid=(grid_m,),
            in_specs=[
                pl.BlockSpec((tm_p, L), lambda i: (i, 0)),   # packed activations
                pl.BlockSpec((L, L), lambda i: (0, 0)),      # resident weight
                pl.BlockSpec((1, L), lambda i: (0, 0)),      # resident bias
            ],
            out_specs=pl.BlockSpec((tm_p, L), lambda i: (i, 0)),
        ),
        compiler_params=pltpu.CompilerParams(
            dimension_semantics=("parallel",),    # megacore-shardable row axis
            vmem_limit_bytes=32 << 20,            # headroom for 16 MiB d-buffered tiles
        ),
    )(xp, wbd, b_packed)

    out = out.reshape(M_round, D)
    if M_round != M:
        out = out[:M]
    return out.reshape(orig_shape)


def _reference(x, weight, bias):
    z = BETA * x
    sp = jnp.where(z > THRESHOLD, x, jnp.log1p(jnp.exp(z)) * INV_BETA)
    return sp @ weight.T + bias


if __name__ == "__main__":
    # Synthetic config: out_channels = (8, 8, 16) -> sum = 32 features.
    out_channels = (8, 8, 16)
    D = sum(out_channels)          # 32
    B, N = 2, 64                   # batch of 2 point clouds, 64 points each

    key = jax.random.PRNGKey(0)
    kx, kw, kb = jax.random.split(key, 3)

    # Deterministic parameter init (mimics nn.Linear uniform(-1/sqrt(D), 1/sqrt(D)))
    bound = 1.0 / jnp.sqrt(jnp.float32(D))
    weight = jax.random.uniform(kw, (D, D), jnp.float32, -bound, bound)
    bias = jax.random.uniform(kb, (D,), jnp.float32, -bound, bound)

    # Pack params once (init-time), not per forward call.
    wbd, b_packed = pack_gs_regress_params(weight, bias)
    fwd = jax.jit(gs_pointcloud_regresser)

    x = jax.random.normal(kx, (B, N, D), dtype=jnp.float32) * 0.5
    out = jax.block_until_ready(fwd(x, wbd, b_packed))
    ref = _reference(x, weight, bias)
    assert out.shape == (B, N, D)
    assert jnp.allclose(out, ref, atol=1e-5, rtol=1e-5)

    # Ragged point count: exercises the <= pack-1 row pad and the ragged final
    # grid block (Mp not a multiple of tm_p) handled by Pallas masking.
    x2 = jax.random.normal(kb, (3, 50, D), dtype=jnp.float32) * 0.5
    out2 = jax.block_until_ready(fwd(x2, wbd, b_packed))
    ref2 = _reference(x2, weight, bias)
    assert out2.shape == (3, 50, D)
    assert jnp.allclose(out2, ref2, atol=1e-5, rtol=1e-5)

    print("KERNEL_OK")
</pallas_src>

<mosaic_0001>
module attributes {stable_mosaic.version = 11 : i64} {
  func.func @_gs_regress_kernel(%arg0: i32, %arg1: memref<16x128xf32, #tpu.memory_space<vmem>>, %arg2: memref<128x128xf32, #tpu.memory_space<vmem>>, %arg3: memref<1x128xf32, #tpu.memory_space<vmem>>, %arg4: memref<16x128xf32, #tpu.memory_space<vmem>>) attributes {dimension_semantics = [#tpu.dimension_semantics<parallel>], iteration_bounds = array<i64: 2>, scalar_prefetch = 0 : i64, scratch_operands = 0 : i64, tpu.core_type = #tpu.core_type<tc>, window_params = [{transform_indices = @transform_0, window_bounds = array<i64: 16, 128>}, {pipeline_mode = #tpu.pipeline_mode<synchronous>, transform_indices = @transform_1, window_bounds = array<i64: 128, 128>}, {pipeline_mode = #tpu.pipeline_mode<synchronous>, transform_indices = @transform_2, window_bounds = array<i64: 1, 128>}, {transform_indices = @transform_3, window_bounds = array<i64: 16, 128>}]} {
    %c0 = arith.constant 0 : index
    %c0_0 = arith.constant 0 : index
    %0 = vector.load %arg1[%c0, %c0_0] : memref<16x128xf32, #tpu.memory_space<vmem>>, vector<16x128xf32>
    %cst = arith.constant 1.000000e+02 : f32
    %1 = vector.broadcast %cst : f32 to vector<16x128xf32>
    %2 = arith.mulf %1, %0 : vector<16x128xf32>
    %cst_1 = arith.constant 2.000000e+01 : f32
    %3 = vector.broadcast %cst_1 : f32 to vector<16x128xf32>
    %4 = arith.cmpf ogt, %2, %3 : vector<16x128xf32>
    %5 = math.exp %2 : vector<16x128xf32>
    %6 = math.log1p %5 : vector<16x128xf32>
    %cst_2 = arith.constant 0.00999999977 : f32
    %7 = vector.broadcast %cst_2 : f32 to vector<16x128xf32>
    %8 = arith.mulf %6, %7 : vector<16x128xf32>
    %9 = arith.select %4, %0, %8 : vector<16x128xi1>, vector<16x128xf32>
    %c0_3 = arith.constant 0 : index
    %c0_4 = arith.constant 0 : index
    %10 = vector.load %arg2[%c0_3, %c0_4] : memref<128x128xf32, #tpu.memory_space<vmem>>, vector<128x128xf32>
    %cst_5 = arith.constant dense<0.000000e+00> : vector<16x128xf32>
    %11 = tpu.matmul %9, %10, %cst_5 {dimension_numbers = #tpu.dot_dimension_numbers<[1], [0], [0], [1], [0, 0, 1, 1], [], []>} : vector<16x128xf32>, vector<128x128xf32>, vector<16x128xf32> -> vector<16x128xf32>
    %c0_6 = arith.constant 0 : index
    %c0_7 = arith.constant 0 : index
    %12 = vector.load %arg3[%c0_6, %c0_7] : memref<1x128xf32, #tpu.memory_space<vmem>>, vector<1x128xf32>
    %13 = vector.broadcast %12 : vector<1x128xf32> to vector<16x128xf32>
    %14 = arith.addf %11, %13 : vector<16x128xf32>
    %c0_8 = arith.constant 0 : index
    %c0_9 = arith.constant 0 : index
    %15 = vector.load %arg4[%c0_8, %c0_9] : memref<16x128xf32, #tpu.memory_space<vmem>>, vector<16x128xf32>
    tpu.vector_store %arg4[%c0_8, %c0_9], %14 {strides = array<i32>} : memref<16x128xf32, #tpu.memory_space<vmem>>, vector<16x128xf32>,
    return
  }
  func.func @transform_0(%arg0: i32) -> (i32, i32) {
    %c0_i32 = arith.constant 0 : i32
    %c0_i32_0 = arith.constant 0 : i32
    return %arg0, %c0_i32 : i32, i32
  }
  func.func @transform_1(%arg0: i32) -> (i32, i32) {
    %c0_i32 = arith.constant 0 : i32
    %c0_i32_0 = arith.constant 0 : i32
    %c0_i32_1 = arith.constant 0 : i32
    return %c0_i32, %c0_i32_0 : i32, i32
  }
  func.func @transform_2(%arg0: i32) -> (i32, i32) {
    %c0_i32 = arith.constant 0 : i32
    %c0_i32_0 = arith.constant 0 : i32
    %c0_i32_1 = arith.constant 0 : i32
    return %c0_i32, %c0_i32_0 : i32, i32
  }
  func.func @transform_3(%arg0: i32) -> (i32, i32) {
    %c0_i32 = arith.constant 0 : i32
    %c0_i32_0 = arith.constant 0 : i32
    return %arg0, %c0_i32 : i32, i32
  }
}

</mosaic_0001>

<llo_original>
// kernel: gs_pointcloud_regresser.1
$region0: #{gs_pointcloud_regresser.1}
  #allocation0 [shape = 'u32[]', space=smem, size = 0x4, offset = 0x4, fixed_abs, tag = 'smem constant byte address 0x4 - core index']
  #allocation1 [shape = 'u32[144,128]{1,0:T(1,128)}', space=vmem, size = 0x12000, scoped, tag = 'internal scratch']
  %s0 = inlined_call_operand.vmem [shape: f32[32,128], index: 0, kind: input, shape index: {}]
  %s1 = inlined_call_operand.vmem [shape: f32[128,128], index: 1, kind: input, shape index: {}]
  %s2 = inlined_call_operand.vmem [shape: f32[1,128], index: 2, kind: input, shape index: {}]
  %s3 = inlined_call_operand.vmem [shape: f32[32,128], index: 3, kind: output, shape index: {}]
  %s4 = sld [smem:[#allocation0]]
  $region45: #{gs_pointcloud_regresser.1} parent=0
    _
  %s6 = ssub.s32 1, %s4
  %s7 = scalar_select 0, %s6, %s4
  loop: start=0, step=1, limit=4
  $region2: #{gs_pointcloud_regresser.1} parent=0 // loop_pre_header
    _
  $region3: #{gs_pointcloud_regresser.1} parent=0 // loop_header
    %s9 = sphi 0, %s13
    %p10 = scmp.ge.s32.totalorder %s9, 4
    %s19 = sphi 0, %s21
    %s22 = sphi 0, %s19
    %s23 = sphi 0, %s22
    %s39 = sphi 0, %s23
    %s43 = sphi 0, %s43
    %s45 = sphi 0, %s43
    %s46 = sphi 0, %s45
    %s60 = sphi 0, %s46
    %s64 = sphi 0, %s64
    %s66 = sphi 0, %s64
    %s67 = sphi 0, %s66
    %s81 = sphi 0, %s67
    %s87 = sphi 0, %s89
    %s90 = sphi 0, %s87
    %s91 = sphi 0, %s90
    %s107 = sphi 0, %s91
  $region4: #{gs_pointcloud_regresser.1} parent=0 // loop_header_branch
    %12 = sbr.rel (%p10) target = $region8
  $region5: #{gs_pointcloud_regresser.1} parent=0 // loop_body
    %s14 = ssub.s32 %s9, 1
    %s15 = ssub.s32 %s9, 2
    %s16 = sadd.s32 %s9, 1
    %s17 = ssub.s32 %s9, %s16
    %p18 = scmp.eq.s32.totalorder %s17, 0
    %s20 = sadd.s32 %s19, 1
    %s21 = scalar_select %p18, %s19, %s20
    %p24 = pneg %p18
    %p25 = scmp.eq.s32.totalorder %s9, 1
    %p26 = por %p24, %p25
    %p27 = scmp.ne.s32.totalorder %s19, %s22
    %p28 = scmp.eq.s32.totalorder %s9, 0
    %p29 = por %p27, %p28
    %p30 = scmp.ne.s32.totalorder %s19, %s22
    %p31 = scmp.eq.s32.totalorder %s14, 1
    %p32 = por %p30, %p31
    %p33 = scmp.ne.s32.totalorder %s22, %s23
    %p34 = scmp.eq.s32.totalorder %s14, 0
    %p35 = por %p33, %p34
    %p36 = scmp.ne.s32.totalorder %s22, %s23
    %p37 = scmp.eq.s32.totalorder %s15, 1
    %p38 = por %p36, %p37
    %p40 = scmp.ne.s32.totalorder %s23, %s39
    %p41 = scmp.eq.s32.totalorder %s15, 0
    %p42 = por %p40, %p41
    %s44 = sadd.s32 %s43, 1
    %p47 = scmp.eq.s32.totalorder %s9, 1
    %p48 = scmp.ne.s32.totalorder %s43, %s45
    %p49 = scmp.eq.s32.totalorder %s9, 0
    %p50 = por %p48, %p49
    %p51 = scmp.ne.s32.totalorder %s43, %s45
    %p52 = scmp.eq.s32.totalorder %s14, 1
    %p53 = por %p51, %p52
    %p54 = scmp.ne.s32.totalorder %s45, %s46
    %p55 = scmp.eq.s32.totalorder %s14, 0
    %p56 = por %p54, %p55
    %p57 = scmp.ne.s32.totalorder %s45, %s46
    %p58 = scmp.eq.s32.totalorder %s15, 1
    %p59 = por %p57, %p58
    %p61 = scmp.ne.s32.totalorder %s46, %s60
    %p62 = scmp.eq.s32.totalorder %s15, 0
    %p63 = por %p61, %p62
    %s65 = sadd.s32 %s64, 1
    %p68 = scmp.eq.s32.totalorder %s9, 1
    %p69 = scmp.ne.s32.totalorder %s64, %s66
    %p70 = scmp.eq.s32.totalorder %s9, 0
    %p71 = por %p69, %p70
    %p72 = scmp.ne.s32.totalorder %s64, %s66
    %p73 = scmp.eq.s32.totalorder %s14, 1
    %p74 = por %p72, %p73
    %p75 = scmp.ne.s32.totalorder %s66, %s67
    %p76 = scmp.eq.s32.totalorder %s14, 0
    %p77 = por %p75, %p76
    %p78 = scmp.ne.s32.totalorder %s66, %s67
    %p79 = scmp.eq.s32.totalorder %s15, 1
    %p80 = por %p78, %p79
    %p82 = scmp.ne.s32.totalorder %s67, %s81
    %p83 = scmp.eq.s32.totalorder %s15, 0
    %p84 = por %p82, %p83
    %s85 = ssub.s32 %s9, %s16
    %p86 = scmp.eq.s32.totalorder %s85, 0
    %s88 = sadd.s32 %s87, 1
    %s89 = scalar_select %p86, %s87, %s88
    %p92 = pneg %p86
    %p93 = scmp.eq.s32.totalorder %s9, 1
    %p94 = por %p92, %p93
    %p95 = scmp.ne.s32.totalorder %s87, %s90
    %p96 = scmp.eq.s32.totalorder %s9, 0
    %p97 = por %p95, %p96
    %p98 = scmp.ne.s32.totalorder %s87, %s90
    %p99 = scmp.eq.s32.totalorder %s14, 1
    %p100 = por %p98, %p99
    %p101 = scmp.ne.s32.totalorder %s90, %s91
    %p102 = scmp.eq.s32.totalorder %s14, 0
    %p103 = por %p101, %p102
    %p104 = scmp.ne.s32.totalorder %s90, %s91
    %p105 = scmp.eq.s32.totalorder %s15, 1
    %p106 = por %p104, %p105
    %p108 = scmp.ne.s32.totalorder %s91, %s107
    %p109 = scmp.eq.s32.totalorder %s15, 0
    %p110 = por %p108, %p109
    %p111 = scmp.le.s32.totalorder 1, %s9
    %p112 = scmp.lt.s32.totalorder %s9, 3
    %p113 = pnand %p111, %p112
    %p114 = pneg %p113
    // Predicated region
    $region9: #{gs_pointcloud_regresser.1} parent=5 // pred_check
      _
    $region10: #{gs_pointcloud_regresser.1} parent=5 // pred_check_branch
      %116 = sbr.rel (%p113) target = $region12
    $region11: #{gs_pointcloud_regresser.1} parent=5 // pred_region
      %s117 = ssub.s32 %s9, 1
      // Predicated region
      $region13: #{gs_pointcloud_regresser.1} parent=11 // pred_check
        %p118 = pneg %p56
      $region14: #{gs_pointcloud_regresser.1} parent=11 // pred_check_branch
        %120 = sbr.rel (%p118) target = $region16
      $region15: #{gs_pointcloud_regresser.1} parent=11 // pred_region
        _
      $region16: #{gs_pointcloud_regresser.1} parent=11 // pred_fallthru
        _
      // Predicated region
      $region17: #{gs_pointcloud_regresser.1} parent=11 // pred_check
        %p121 = pneg %p77
      $region18: #{gs_pointcloud_regresser.1} parent=11 // pred_check_branch
        %123 = sbr.rel (%p121) target = $region20
      $region19: #{gs_pointcloud_regresser.1} parent=11 // pred_region
        _
      $region20: #{gs_pointcloud_regresser.1} parent=11 // pred_fallthru
        _
    $region12: #{gs_pointcloud_regresser.1} parent=5 // pred_fallthru
      _
    %p124 = scmp.lt.s32.totalorder %s9, 2
    // Predicated region
    $region21: #{gs_pointcloud_regresser.1} parent=5 // pred_check
      %p125 = pneg %p124
    $region22: #{gs_pointcloud_regresser.1} parent=5 // pred_check_branch
      %127 = sbr.rel (%p125) target = $region24
    $region23: #{gs_pointcloud_regresser.1} parent=5 // pred_region
      // Predicated region
      $region25: #{gs_pointcloud_regresser.1} parent=23 // pred_check
        %p128 = pneg %p29
      $region26: #{gs_pointcloud_regresser.1} parent=23 // pred_check_branch
        %130 = sbr.rel (%p128) target = $region28
      $region27: #{gs_pointcloud_regresser.1} parent=23 // pred_region
        %s131 = smul.u32 2, %s9
        %p132 = scmp.lt.s32.totalorder %s131, 3
        %s133 = scalar_select %p132, %s131, 3
        %s134 = smul.addr %s133, 8
        %s135 = scalar_lea.vmem %s0, %s134
        %s136 = smul.u32 2, %s9
      $region28: #{gs_pointcloud_regresser.1} parent=23 // pred_fallthru
        _
    $region24: #{gs_pointcloud_regresser.1} parent=5 // pred_fallthru
      _
    %p137 = scmp.le.s32.totalorder 1, %s9
    %p138 = scmp.lt.s32.totalorder %s9, 3
    %p139 = pnand %p137, %p138
    %p140 = pneg %p139
    // Predicated region
    $region29: #{gs_pointcloud_regresser.1} parent=5 // pred_check
      _
    $region30: #{gs_pointcloud_regresser.1} parent=5 // pred_check_branch
      %142 = sbr.rel (%p139) target = $region32
    $region31: #{gs_pointcloud_regresser.1} parent=5 // pred_region
      %s143 = ssub.s32 %s9, 1
      %s144 = smul.u32 2, %s14
      %p145 = scmp.lt.s32.totalorder %s144, 3
      %s146 = scalar_select %p145, %s144, 3
      %s147 = smul.addr %s146, 8
      %s148 = scalar_lea.vmem %s0, %s147
      %p149 = pneg %p35
      %p150 = pneg %p32
      %p151 = pneg %p56
      %p152 = pneg %p53
      %p153 = pneg %p77
      %p154 = pneg %p74
      %p155 = pneg %p103
      %p156 = pneg %p100
      %s157 = smul.u32 2, %s14
      %p158 = scmp.lt.s32.totalorder %s157, 3
      %s159 = scalar_select %p158, %s157, 3
      %s160 = smul.addr %s159, 8
      %s161 = scalar_lea.vmem %s3, %s160
      %s162 = smul.u32 2, %s14
      %p163 = scmp.lt.s32.totalorder %s162, 3
      %s164 = scalar_select %p163, %s162, 3
      %s165 = smul.addr %s164, 8
      %s166 = scalar_lea.vmem %s0, %s165
      %s167 = smul.u32 2, %s14
      %s168 = smul.u32 2, %s14
      %p169 = scmp.lt.s32.totalorder %s168, 3
      %s170 = scalar_select %p169, %s168, 3
      %s171 = smul.addr %s170, 8
      %s172 = scalar_lea.vmem %s3, %s171
      %s173 = smul.u32 2, %s14
      %v174 = vld [vmem:[%s166] sm:$0xff]
      %v175 = vld [vmem:[%s166 + $0x8] sm:$0xff]
      %v176 = vmul.f32 %v174, 100.0
      %v177 = vmul.f32 %v175, 100.0
      %vm178 = vcmp.gt.f32.partialorder %v176, 20.0
      %vm179 = vcmp.gt.f32.partialorder %v177, 20.0
      %v180 = vmul.f32 %v176, 1.442695
      %v181 = vpow.pop %v180
      %v182 = vmul.f32 %v177, 1.442695
      %v183 = vpow.pop %v182
      %v184 = vadd.f32 %v181, 1.0
      %v185 = vlog2.pop %v184
      %v186 = vmul.f32 %v185, 0.6931472
      %v187 = vmul.f32 -0.5, %v181
      %v188 = vadd.f32 %v187, 1.0
      %v189 = vmul.f32 %v188, %v181
      %v190 = vand.u32 2147483647, %v181
      %vm191 = vcmp.lt.f32.partialorder %v190, 0.0004427343
      %v192 = vsel %vm191, %v189, %v186
      %v193 = vadd.f32 %v183, 1.0
      %v194 = vlog2.pop %v193
      %v195 = vmul.f32 %v194, 0.6931472
      %v196 = vmul.f32 -0.5, %v183
      %v197 = vadd.f32 %v196, 1.0
      %v198 = vmul.f32 %v197, %v183
      %v199 = vand.u32 2147483647, %v183
      %vm200 = vcmp.lt.f32.partialorder %v199, 0.0004427343
      %v201 = vsel %vm200, %v198, %v195
      %v202 = vmul.f32 %v192, 0.01
      %v203 = vmul.f32 %v201, 0.01
      %v204 = vsel %vm178, %v174, %v202
      %v205 = vsel %vm179, %v175, %v203
      %v206 = vld [vmem:[%s1] sm:$0xff]
      %v207 = vld [vmem:[%s1 + $0x8] sm:$0xff]
      %v208 = vld [vmem:[%s1 + $0x10] sm:$0xff]
      %v209 = vld [vmem:[%s1 + $0x18] sm:$0xff]
      %v210 = vld [vmem:[%s1 + $0x20] sm:$0xff]
      %v211 = vld [vmem:[%s1 + $0x28] sm:$0xff]
      %v212 = vld [vmem:[%s1 + $0x30] sm:$0xff]
      %v213 = vld [vmem:[%s1 + $0x38] sm:$0xff]
      %v214 = vld [vmem:[%s1 + $0x40] sm:$0xff]
      %v215 = vld [vmem:[%s1 + $0x48] sm:$0xff]
      %v216 = vld [vmem:[%s1 + $0x50] sm:$0xff]
      %v217 = vld [vmem:[%s1 + $0x58] sm:$0xff]
      %v218 = vld [vmem:[%s1 + $0x60] sm:$0xff]
      %v219 = vld [vmem:[%s1 + $0x68] sm:$0xff]
      %v220 = vld [vmem:[%s1 + $0x70] sm:$0xff]
      %v221 = vld [vmem:[%s1 + $0x78] sm:$0xff]
      %v222 = vld [vmem:[%s2] sm:$0x1]
      %v224 = vlaneseq
      %v225 = vshrl.u32 %v224, 7
      %v226 = vsub.s32 0, %v225
      %v227 = vrot.slane %v222, %v226
      %229 = vmatprep.subr.mxu0 0.0
      %230 = vmatpush1.msra.mxu0 %v206
      %231 = vmatprep.subr.mxu0 0.0
      %232 = vmatpush1.msra.mxu0 %v207
      %233 = vmatprep.subr.mxu0 0.0
      %234 = vmatpush1.msra.mxu0 %v208
      %235 = vmatprep.subr.mxu0 0.0
      %236 = vmatpush1.msra.mxu0 %v209
      %237 = vmatprep.subr.mxu0 0.0
      %238 = vmatpush1.msra.mxu0 %v210
      %239 = vmatprep.subr.mxu0 0.0
      %240 = vmatpush1.msra.mxu0 %v211
      %241 = vmatprep.subr.mxu0 0.0
      %242 = vmatpush1.msra.mxu0 %v212
      %243 = vmatprep.subr.mxu0 0.0
      %244 = vmatpush1.msra.mxu0 %v213
      %245 = vmatprep.subr.mxu0 0.0
      %246 = vmatpush1.msra.mxu0 %v214
      %247 = vmatprep.subr.mxu0 0.0
      %248 = vmatpush1.msra.mxu0 %v215
      %249 = vmatprep.subr.mxu0 0.0
      %250 = vmatpush1.msra.mxu0 %v216
      %251 = vmatprep.subr.mxu0 0.0
      %252 = vmatpush1.msra.mxu0 %v217
      %253 = vmatprep.subr.mxu0 0.0
      %254 = vmatpush1.msra.mxu0 %v218
      %255 = vmatprep.subr.mxu0 0.0
      %256 = vmatpush1.msra.mxu0 %v219
      %257 = vmatprep.subr.mxu0 0.0
      %258 = vmatpush1.msra.mxu0 %v220
      %259 = vmatprep.subr.mxu0 0.0
      %260 = vmatpush1.msra.mxu0 %v221
      %261 = vmatprep.subr.mxu0 0.0
      %262 = vmatpush1.msra.mxu0 0.0
      %263 = vmatprep.subr.mxu0 0.0
      %264 = vmatpush1.msra.mxu0 0.0
      %265 = vmatprep.subr.mxu0 0.0
      %266 = vmatpush1.msra.mxu0 0.0
      %267 = vmatprep.subr.mxu0 0.0
      %268 = vmatpush1.msra.mxu0 0.0
      %269 = vmatprep.subr.mxu0 0.0
      %270 = vmatpush1.msra.mxu0 0.0
      %271 = vmatprep.subr.mxu0 0.0
      %272 = vmatpush1.msra.mxu0 0.0
      %273 = vmatprep.subr.mxu0 0.0
      %274 = vmatpush1.msra.mxu0 0.0
      %275 = vmatprep.subr.mxu0 0.0
      %276 = vmatpush1.msra.mxu0 0.0
      %277 = vmatprep.subr.mxu0 0.0
      %278 = vmatpush1.msra.mxu0 0.0
      %279 = vmatprep.subr.mxu0 0.0
      %280 = vmatpush1.msra.mxu0 0.0
      %281 = vmatprep.subr.mxu0 0.0
      %282 = vmatpush1.msra.mxu0 0.0
      %283 = vmatprep.subr.mxu0 0.0
      %284 = vmatpush1.msra.mxu0 0.0
      %285 = vmatprep.subr.mxu0 0.0
      %286 = vmatpush1.msra.mxu0 0.0
      %287 = vmatprep.subr.mxu0 0.0
      %288 = vmatpush1.msra.mxu0 0.0
      %289 = vmatprep.subr.mxu0 0.0
      %290 = vmatpush1.msra.mxu0 0.0
      %291 = vmatprep.subr.mxu0 0.0
      %292 = vmatpush1.msra.mxu0 0.0
      %293 = vmatprep.mubr.f32.mxu0 0.0
      %294 = vmatmul.mubr.f32.gmra.mrb[0].mxu0 %v204
      %v295 = vpop.f32.mrb[0].mxu0
      %v296 = vadd.f32 %v227, %v295
      %v297 = vpop.f32.mrb[0].mxu0
      %298 = vmatprep.mubr.f32.mxu0 0.0
      %299 = vmatmul.mubr.f32.gmra.mrb[0].mxu0 %v205
      %v300 = vpop.f32.mrb[0].mxu0
      %v301 = vadd.f32 %v227, %v300
      %v302 = vpop.f32.mrb[0].mxu0
      %303 = vdwg.mxu0
      %304 = vst [vmem:[%s172] sm:$0xff] %v296
      %305 = vst [vmem:[%s172 + $0x8] sm:$0xff] %v301
      %s306 = smul.u32 2, %s14
      %p307 = scmp.lt.s32.totalorder %s306, 3
      %s308 = scalar_select %p307, %s306, 3
      %s309 = smul.addr %s308, 8
      %s310 = scalar_lea.vmem %s3, %s309
      // Predicated region
      $region33: #{gs_pointcloud_regresser.1} parent=31 // pred_check
        %p311 = pneg %p100
      $region34: #{gs_pointcloud_regresser.1} parent=31 // pred_check_branch
        %313 = sbr.rel (%p311) target = $region36
      $region35: #{gs_pointcloud_regresser.1} parent=31 // pred_region
        %s314 = smul.u32 2, %s14
      $region36: #{gs_pointcloud_regresser.1} parent=31 // pred_fallthru
        _
    $region32: #{gs_pointcloud_regresser.1} parent=5 // pred_fallthru
      _
    %p315 = scmp.le.s32.totalorder 2, %s9
    // Predicated region
    $region37: #{gs_pointcloud_regresser.1} parent=5 // pred_check
      %p316 = pneg %p315
    $region38: #{gs_pointcloud_regresser.1} parent=5 // pred_check_branch
      %318 = sbr.rel (%p316) target = $region40
    $region39: #{gs_pointcloud_regresser.1} parent=5 // pred_region
      %s319 = ssub.s32 %s9, 2
      // Predicated region
      $region41: #{gs_pointcloud_regresser.1} parent=39 // pred_check
        %p320 = pneg %p106
      $region42: #{gs_pointcloud_regresser.1} parent=39 // pred_check_branch
        %322 = sbr.rel (%p320) target = $region44
      $region43: #{gs_pointcloud_regresser.1} parent=39 // pred_region
        %s323 = smul.u32 2, %s15
        %p324 = scmp.lt.s32.totalorder %s323, 3
        %s325 = scalar_select %p324, %s323, 3
        %s326 = smul.addr %s325, 8
        %s327 = scalar_lea.vmem %s3, %s326
      $region44: #{gs_pointcloud_regresser.1} parent=39 // pred_fallthru
        _
    $region40: #{gs_pointcloud_regresser.1} parent=5 // pred_fallthru
      _
  $region6: #{gs_pointcloud_regresser.1} parent=0 // loop_footer
    %s13 = sadd.s32 1, %s9
  $region7: #{gs_pointcloud_regresser.1} parent=0 // loop_footer_branch
    %8 = sbr.rel target = $region3
  $region8: #{gs_pointcloud_regresser.1} parent=0 // loop_exit
    _

</llo_original>
